<compile_context>
chip_gen: v7x
topology: tpu7x:2x2x1
jax: 0.10.0
libtpu: 0.0.40
codegen_flags: <defaults>
</compile_context>

<pallas_src>
import functools

import jax
import jax.numpy as jnp
from jax.experimental import pallas as pl
from jax.experimental.pallas import tpu as pltpu


def _round_up(x, m):
    return ((x + m - 1) // m) * m


def _fused_conv_kernel(wf_ref, bf_ref, x_ref, o_ref, *, K, W, p_out):
    """Fused depthwise∘pointwise conv for one batch image.

    wf_ref: (K*K, Cout, Cin)  per-tap fused weights (resident across steps)
    bf_ref: (Cout, 1)         fused bias (resident across steps)
    x_ref : (Cin, P_in)       flattened (H*W) activations, zero-padded lanes
    o_ref : (Cout, P_out)     flattened output; position l = ho*W + wo is valid
                              for ho < Ho, wo < Wo (rest sliced off outside)
    """
    cout, _ = o_ref.shape
    acc = jnp.zeros((cout, p_out), jnp.float32)
    # In-VMEM im2col: K*K static lane-offset slices of the resident slab, each
    # feeding one accumulating MXU GEMM (Cout, Cin) @ (Cin, P_out).
    for kh in range(K):
        for kw in range(K):
            t = kh * K + kw
            off = kh * W + kw
            tap = x_ref[:, off:off + p_out]               # (Cin, P_out)
            acc = acc + jax.lax.dot_general(
                wf_ref[t], tap,
                dimension_numbers=(((1,), (0,)), ((), ())),
                preferred_element_type=jnp.float32)
    acc = acc + bf_ref[...].astype(jnp.float32)           # (Cout,1) broadcasts
    o_ref[...] = acc.astype(o_ref.dtype)


def mixed_conv2d(x_nchw, dw_weight, dw_bias, pw_weight, pw_bias, *, K):
    """MixedConv2d forward (depthwise KxK, groups=Cin, then pointwise 1x1).

    x_nchw   : (N, Cin, H, W)
    dw_weight: (Cin, 1, K, K)   PyTorch depthwise Conv2d weight
    dw_bias  : (Cin,)
    pw_weight: (Cout, Cin, 1, 1)
    pw_bias  : (Cout,)
    returns  : (N, Cout, H-K+1, W-K+1)   (NCHW, like PyTorch)
    """
    N, Cin, H, W = x_nchw.shape
    Cout = pw_weight.shape[0]
    Ho, Wo = H - K + 1, W - K + 1
    HW = H * W
    max_off = (K - 1) * W + (K - 1)          # largest in-kernel tap shift
    p_out = _round_up(HW, 128)               # lane-dense output width
    p_in = _round_up(p_out + max_off, 128)   # input slab width incl. halo

    dtype = x_nchw.dtype
    itemsize = jnp.dtype(dtype).itemsize

    # ---- plain-JAX parameter fusion (tiny) + zero lane padding of x ----
    dw = dw_weight[:, 0, :, :]               # (Cin, K, K)
    pw = pw_weight[:, :, 0, 0]               # (Cout, Cin)
    # wf[kh*K+kw, co, ci] = pw[co,ci] * dw[ci,kh,kw]
    wf = jnp.einsum('oc,ckl->kloc', pw, dw).reshape(K * K, Cout, Cin)
    bf = (pw_bias + pw @ dw_bias).reshape(Cout, 1)

    # Free reshape (contiguous) + small zero pad; no K^2 im2col blow-up in HBM.
    x_flat = jnp.pad(x_nchw.reshape(N, Cin, HW),
                     ((0, 0), (0, 0), (0, p_in - HW)))

    flops = 2 * N * K * K * Cin * Cout * p_out
    bytes_accessed = (x_flat.size + wf.size + bf.size
                      + N * Cout * p_out) * itemsize

    kernel = functools.partial(_fused_conv_kernel, K=K, W=W, p_out=p_out)

    out_flat = pl.pallas_call(
        kernel,
        out_shape=jax.ShapeDtypeStruct((N, Cout, p_out), dtype),
        grid_spec=pltpu.PrefetchScalarGridSpec(
            num_scalar_prefetch=0,
            grid=(N,),                                            # flat, parallel
            in_specs=[
                pl.BlockSpec((K * K, Cout, Cin), lambda n: (0, 0, 0)),   # weights
                pl.BlockSpec((Cout, 1), lambda n: (0, 0)),               # bias
                pl.BlockSpec((None, Cin, p_in), lambda n: (n, 0, 0)),    # x slab
            ],
            out_specs=pl.BlockSpec((None, Cout, p_out), lambda n: (n, 0, 0)),
        ),
        compiler_params=pltpu.CompilerParams(
            dimension_semantics=("parallel",)),
        cost_estimate=pl.CostEstimate(
            flops=flops, transcendentals=0, bytes_accessed=bytes_accessed),
    )(wf.astype(dtype), bf.astype(dtype), x_flat)

    # Valid outputs live at flat position l = ho*W + wo for ho < Ho, wo < Wo.
    out = out_flat[:, :, :HW].reshape(N, Cout, H, W)[:, :, :Ho, :Wo]
    return out


def _reference(x_nchw, dw_weight, dw_bias, pw_weight, pw_bias):
    """Pure-JAX reference matching torch.nn.Conv2d semantics (VALID, stride 1)."""
    Cin = x_nchw.shape[1]
    dn = ("NCHW", "OIHW", "NCHW")
    y = jax.lax.conv_general_dilated(
        x_nchw, dw_weight, window_strides=(1, 1), padding="VALID",
        feature_group_count=Cin, dimension_numbers=dn)
    y = y + dw_bias[None, :, None, None]
    z = jax.lax.conv_general_dilated(
        y, pw_weight, window_strides=(1, 1), padding="VALID",
        dimension_numbers=dn)
    z = z + pw_bias[None, :, None, None]
    return z


if __name__ == "__main__":
    # Small shapes consistent with the module.
    N, Cin, Cout, H, W, K = 2, 4, 8, 16, 16, 3

    key = jax.random.PRNGKey(0)
    kx, k1, k2, k3, k4 = jax.random.split(key, 5)

    x = jax.random.normal(kx, (N, Cin, H, W), dtype=jnp.float32)
    # Deterministic synthetic parameters (shapes from nn.Conv2d in __init__).
    dw_weight = jax.random.normal(k1, (Cin, 1, K, K), dtype=jnp.float32) * 0.1
    dw_bias = jax.random.normal(k2, (Cin,), dtype=jnp.float32) * 0.1
    pw_weight = jax.random.normal(k3, (Cout, Cin, 1, 1), dtype=jnp.float32) * 0.1
    pw_bias = jax.random.normal(k4, (Cout,), dtype=jnp.float32) * 0.1

    out = mixed_conv2d(x, dw_weight, dw_bias, pw_weight, pw_bias, K=K)
    out = jax.block_until_ready(out)

    ref = _reference(x, dw_weight, dw_bias, pw_weight, pw_bias)
    assert out.shape == (N, Cout, H - K + 1, W - K + 1), out.shape
    assert jnp.allclose(out, ref, atol=1e-4, rtol=1e-4), (
        float(jnp.max(jnp.abs(out - ref))))

    print("KERNEL_OK")
</pallas_src>

<mosaic_0001>
module attributes {stable_mosaic.version = 11 : i64} {
  func.func @_fused_conv_kernel(%arg0: i32, %arg1: memref<9x8x4xf32, #tpu.memory_space<vmem>>, %arg2: memref<8x1xf32, #tpu.memory_space<vmem>>, %arg3: memref<1x4x384xf32, #tpu.memory_space<vmem>>, %arg4: memref<1x8x256xf32, #tpu.memory_space<vmem>>) attributes {dimension_semantics = [#tpu.dimension_semantics<parallel>], iteration_bounds = array<i64: 2>, scalar_prefetch = 0 : i64, scratch_operands = 0 : i64, tpu.core_type = #tpu.core_type<tc>, window_params = [{pipeline_mode = #tpu.pipeline_mode<synchronous>, transform_indices = @transform_0, window_bounds = array<i64: 9, 8, 4>}, {pipeline_mode = #tpu.pipeline_mode<synchronous>, transform_indices = @transform_1, window_bounds = array<i64: 8, 1>}, {transform_indices = @transform_2, window_bounds = array<i64: 1, 4, 384>}, {transform_indices = @transform_3, window_bounds = array<i64: 1, 8, 256>}]} {
    %cst = arith.constant 0.000000e+00 : f32
    %0 = vector.broadcast %cst : f32 to vector<8x256xf32>
    %c0 = arith.constant 0 : index
    %c0_0 = arith.constant 0 : index
    %c0_1 = arith.constant 0 : index
    %1 = vector.load %arg3[%c0, %c0_0, %c0_1] : memref<1x4x384xf32, #tpu.memory_space<vmem>>, vector<1x4x256xf32>
    %2 = vector.shape_cast %1 : vector<1x4x256xf32> to vector<4x256xf32>
    %c0_2 = arith.constant 0 : index
    %c0_3 = arith.constant 0 : index
    %c0_4 = arith.constant 0 : index
    %3 = vector.load %arg1[%c0_2, %c0_3, %c0_4] : memref<9x8x4xf32, #tpu.memory_space<vmem>>, vector<1x8x4xf32>
    %4 = vector.shape_cast %3 : vector<1x8x4xf32> to vector<8x4xf32>
    %cst_5 = arith.constant dense<0.000000e+00> : vector<8x256xf32>
    %5 = tpu.matmul %4, %2, %cst_5 {dimension_numbers = #tpu.dot_dimension_numbers<[1], [0], [0], [1], [0, 0, 1, 1], [], []>} : vector<8x4xf32>, vector<4x256xf32>, vector<8x256xf32> -> vector<8x256xf32>
    %6 = arith.addf %0, %5 : vector<8x256xf32>
    %c0_6 = arith.constant 0 : index
    %c0_7 = arith.constant 0 : index
    %c1 = arith.constant 1 : index
    %7 = vector.load %arg3[%c0_6, %c0_7, %c1] : memref<1x4x384xf32, #tpu.memory_space<vmem>>, vector<1x4x256xf32>
    %8 = vector.shape_cast %7 : vector<1x4x256xf32> to vector<4x256xf32>
    %c1_8 = arith.constant 1 : index
    %c0_9 = arith.constant 0 : index
    %c0_10 = arith.constant 0 : index
    %9 = vector.load %arg1[%c1_8, %c0_9, %c0_10] : memref<9x8x4xf32, #tpu.memory_space<vmem>>, vector<1x8x4xf32>
    %10 = vector.shape_cast %9 : vector<1x8x4xf32> to vector<8x4xf32>
    %cst_11 = arith.constant dense<0.000000e+00> : vector<8x256xf32>
    %11 = tpu.matmul %10, %8, %cst_11 {dimension_numbers = #tpu.dot_dimension_numbers<[1], [0], [0], [1], [0, 0, 1, 1], [], []>} : vector<8x4xf32>, vector<4x256xf32>, vector<8x256xf32> -> vector<8x256xf32>
    %12 = arith.addf %6, %11 : vector<8x256xf32>
    %c0_12 = arith.constant 0 : index
    %c0_13 = arith.constant 0 : index
    %c2 = arith.constant 2 : index
    %13 = vector.load %arg3[%c0_12, %c0_13, %c2] : memref<1x4x384xf32, #tpu.memory_space<vmem>>, vector<1x4x256xf32>
    %14 = vector.shape_cast %13 : vector<1x4x256xf32> to vector<4x256xf32>
    %c2_14 = arith.constant 2 : index
    %c0_15 = arith.constant 0 : index
    %c0_16 = arith.constant 0 : index
    %15 = vector.load %arg1[%c2_14, %c0_15, %c0_16] : memref<9x8x4xf32, #tpu.memory_space<vmem>>, vector<1x8x4xf32>
    %16 = vector.shape_cast %15 : vector<1x8x4xf32> to vector<8x4xf32>
    %cst_17 = arith.constant dense<0.000000e+00> : vector<8x256xf32>
    %17 = tpu.matmul %16, %14, %cst_17 {dimension_numbers = #tpu.dot_dimension_numbers<[1], [0], [0], [1], [0, 0, 1, 1], [], []>} : vector<8x4xf32>, vector<4x256xf32>, vector<8x256xf32> -> vector<8x256xf32>
    %18 = arith.addf %12, %17 : vector<8x256xf32>
    %c0_18 = arith.constant 0 : index
    %c0_19 = arith.constant 0 : index
    %c16 = arith.constant 16 : index
    %19 = vector.load %arg3[%c0_18, %c0_19, %c16] : memref<1x4x384xf32, #tpu.memory_space<vmem>>, vector<1x4x256xf32>
    %20 = vector.shape_cast %19 : vector<1x4x256xf32> to vector<4x256xf32>
    %c3 = arith.constant 3 : index
    %c0_20 = arith.constant 0 : index
    %c0_21 = arith.constant 0 : index
    %21 = vector.load %arg1[%c3, %c0_20, %c0_21] : memref<9x8x4xf32, #tpu.memory_space<vmem>>, vector<1x8x4xf32>
    %22 = vector.shape_cast %21 : vector<1x8x4xf32> to vector<8x4xf32>
    %cst_22 = arith.constant dense<0.000000e+00> : vector<8x256xf32>
    %23 = tpu.matmul %22, %20, %cst_22 {dimension_numbers = #tpu.dot_dimension_numbers<[1], [0], [0], [1], [0, 0, 1, 1], [], []>} : vector<8x4xf32>, vector<4x256xf32>, vector<8x256xf32> -> vector<8x256xf32>
    %24 = arith.addf %18, %23 : vector<8x256xf32>
    %c0_23 = arith.constant 0 : index
    %c0_24 = arith.constant 0 : index
    %c17 = arith.constant 17 : index
    %25 = vector.load %arg3[%c0_23, %c0_24, %c17] : memref<1x4x384xf32, #tpu.memory_space<vmem>>, vector<1x4x256xf32>
    %26 = vector.shape_cast %25 : vector<1x4x256xf32> to vector<4x256xf32>
    %c4 = arith.constant 4 : index
    %c0_25 = arith.constant 0 : index
    %c0_26 = arith.constant 0 : index
    %27 = vector.load %arg1[%c4, %c0_25, %c0_26] : memref<9x8x4xf32, #tpu.memory_space<vmem>>, vector<1x8x4xf32>
    %28 = vector.shape_cast %27 : vector<1x8x4xf32> to vector<8x4xf32>
    %cst_27 = arith.constant dense<0.000000e+00> : vector<8x256xf32>
    %29 = tpu.matmul %28, %26, %cst_27 {dimension_numbers = #tpu.dot_dimension_numbers<[1], [0], [0], [1], [0, 0, 1, 1], [], []>} : vector<8x4xf32>, vector<4x256xf32>, vector<8x256xf32> -> vector<8x256xf32>
    %30 = arith.addf %24, %29 : vector<8x256xf32>
    %c0_28 = arith.constant 0 : index
    %c0_29 = arith.constant 0 : index
    %c18 = arith.constant 18 : index
    %31 = vector.load %arg3[%c0_28, %c0_29, %c18] : memref<1x4x384xf32, #tpu.memory_space<vmem>>, vector<1x4x256xf32>
    %32 = vector.shape_cast %31 : vector<1x4x256xf32> to vector<4x256xf32>
    %c5 = arith.constant 5 : index
    %c0_30 = arith.constant 0 : index
    %c0_31 = arith.constant 0 : index
    %33 = vector.load %arg1[%c5, %c0_30, %c0_31] : memref<9x8x4xf32, #tpu.memory_space<vmem>>, vector<1x8x4xf32>
    %34 = vector.shape_cast %33 : vector<1x8x4xf32> to vector<8x4xf32>
    %cst_32 = arith.constant dense<0.000000e+00> : vector<8x256xf32>
    %35 = tpu.matmul %34, %32, %cst_32 {dimension_numbers = #tpu.dot_dimension_numbers<[1], [0], [0], [1], [0, 0, 1, 1], [], []>} : vector<8x4xf32>, vector<4x256xf32>, vector<8x256xf32> -> vector<8x256xf32>
    %36 = arith.addf %30, %35 : vector<8x256xf32>
    %c0_33 = arith.constant 0 : index
    %c0_34 = arith.constant 0 : index
    %c32 = arith.constant 32 : index
    %37 = vector.load %arg3[%c0_33, %c0_34, %c32] : memref<1x4x384xf32, #tpu.memory_space<vmem>>, vector<1x4x256xf32>
    %38 = vector.shape_cast %37 : vector<1x4x256xf32> to vector<4x256xf32>
    %c6 = arith.constant 6 : index
    %c0_35 = arith.constant 0 : index
    %c0_36 = arith.constant 0 : index
    %39 = vector.load %arg1[%c6, %c0_35, %c0_36] : memref<9x8x4xf32, #tpu.memory_space<vmem>>, vector<1x8x4xf32>
    %40 = vector.shape_cast %39 : vector<1x8x4xf32> to vector<8x4xf32>
    %cst_37 = arith.constant dense<0.000000e+00> : vector<8x256xf32>
    %41 = tpu.matmul %40, %38, %cst_37 {dimension_numbers = #tpu.dot_dimension_numbers<[1], [0], [0], [1], [0, 0, 1, 1], [], []>} : vector<8x4xf32>, vector<4x256xf32>, vector<8x256xf32> -> vector<8x256xf32>
    %42 = arith.addf %36, %41 : vector<8x256xf32>
    %c0_38 = arith.constant 0 : index
    %c0_39 = arith.constant 0 : index
    %c33 = arith.constant 33 : index
    %43 = vector.load %arg3[%c0_38, %c0_39, %c33] : memref<1x4x384xf32, #tpu.memory_space<vmem>>, vector<1x4x256xf32>
    %44 = vector.shape_cast %43 : vector<1x4x256xf32> to vector<4x256xf32>
    %c7 = arith.constant 7 : index
    %c0_40 = arith.constant 0 : index
    %c0_41 = arith.constant 0 : index
    %45 = vector.load %arg1[%c7, %c0_40, %c0_41] : memref<9x8x4xf32, #tpu.memory_space<vmem>>, vector<1x8x4xf32>
    %46 = vector.shape_cast %45 : vector<1x8x4xf32> to vector<8x4xf32>
    %cst_42 = arith.constant dense<0.000000e+00> : vector<8x256xf32>
    %47 = tpu.matmul %46, %44, %cst_42 {dimension_numbers = #tpu.dot_dimension_numbers<[1], [0], [0], [1], [0, 0, 1, 1], [], []>} : vector<8x4xf32>, vector<4x256xf32>, vector<8x256xf32> -> vector<8x256xf32>
    %48 = arith.addf %42, %47 : vector<8x256xf32>
    %c0_43 = arith.constant 0 : index
    %c0_44 = arith.constant 0 : index
    %c34 = arith.constant 34 : index
    %49 = vector.load %arg3[%c0_43, %c0_44, %c34] : memref<1x4x384xf32, #tpu.memory_space<vmem>>, vector<1x4x256xf32>
    %50 = vector.shape_cast %49 : vector<1x4x256xf32> to vector<4x256xf32>
    %c8 = arith.constant 8 : index
    %c0_45 = arith.constant 0 : index
    %c0_46 = arith.constant 0 : index
    %51 = vector.load %arg1[%c8, %c0_45, %c0_46] : memref<9x8x4xf32, #tpu.memory_space<vmem>>, vector<1x8x4xf32>
    %52 = vector.shape_cast %51 : vector<1x8x4xf32> to vector<8x4xf32>
    %cst_47 = arith.constant dense<0.000000e+00> : vector<8x256xf32>
    %53 = tpu.matmul %52, %50, %cst_47 {dimension_numbers = #tpu.dot_dimension_numbers<[1], [0], [0], [1], [0, 0, 1, 1], [], []>} : vector<8x4xf32>, vector<4x256xf32>, vector<8x256xf32> -> vector<8x256xf32>
    %54 = arith.addf %48, %53 : vector<8x256xf32>
    %c0_48 = arith.constant 0 : index
    %c0_49 = arith.constant 0 : index
    %55 = vector.load %arg2[%c0_48, %c0_49] : memref<8x1xf32, #tpu.memory_space<vmem>>, vector<8x1xf32>
    %56 = vector.broadcast %55 : vector<8x1xf32> to vector<8x256xf32>
    %57 = arith.addf %54, %56 : vector<8x256xf32>
    %c0_50 = arith.constant 0 : index
    %c0_51 = arith.constant 0 : index
    %c0_52 = arith.constant 0 : index
    %58 = vector.load %arg4[%c0_50, %c0_51, %c0_52] : memref<1x8x256xf32, #tpu.memory_space<vmem>>, vector<1x8x256xf32>
    %59 = vector.shape_cast %58 : vector<1x8x256xf32> to vector<8x256xf32>
    %60 = vector.shape_cast %57 : vector<8x256xf32> to vector<1x8x256xf32>
    tpu.vector_store %arg4[%c0_50, %c0_51, %c0_52], %60 {strides = array<i32>} : memref<1x8x256xf32, #tpu.memory_space<vmem>>, vector<1x8x256xf32>,
    return
  }
  func.func @transform_0(%arg0: i32) -> (i32, i32, i32) {
    %c0_i32 = arith.constant 0 : i32
    %c0_i32_0 = arith.constant 0 : i32
    %c0_i32_1 = arith.constant 0 : i32
    %c0_i32_2 = arith.constant 0 : i32
    return %c0_i32, %c0_i32_0, %c0_i32_1 : i32, i32, i32
  }
  func.func @transform_1(%arg0: i32) -> (i32, i32) {
    %c0_i32 = arith.constant 0 : i32
    %c0_i32_0 = arith.constant 0 : i32
    %c0_i32_1 = arith.constant 0 : i32
    return %c0_i32, %c0_i32_0 : i32, i32
  }
  func.func @transform_2(%arg0: i32) -> (i32, i32, i32) {
    %c0_i32 = arith.constant 0 : i32
    %c0_i32_0 = arith.constant 0 : i32
    %c0_i32_1 = arith.constant 0 : i32
    return %arg0, %c0_i32, %c0_i32_0 : i32, i32, i32
  }
  func.func @transform_3(%arg0: i32) -> (i32, i32, i32) {
    %c0_i32 = arith.constant 0 : i32
    %c0_i32_0 = arith.constant 0 : i32
    %c0_i32_1 = arith.constant 0 : i32
    return %arg0, %c0_i32, %c0_i32_0 : i32, i32, i32
  }
}

</mosaic_0001>

<llo_original>
// kernel: tpu_custom_call.1
$region0: #{tpu_custom_call.1}
  #allocation0 [shape = 'u32[]', space=smem, size = 0x4, offset = 0x4, fixed_abs, tag = 'smem constant byte address 0x4 - core index']
  #allocation1 [shape = 'u32[144,128]{1,0:T(1,128)}', space=vmem, size = 0x12000, scoped, tag = 'internal scratch']
  %s0 = inlined_call_operand.vmem [shape: f32[9,8,4], index: 0, kind: input, shape index: {}]
  %s1 = inlined_call_operand.vmem [shape: f32[8,1], index: 1, kind: input, shape index: {}]
  %s2 = inlined_call_operand.vmem [shape: f32[2,4,384], index: 2, kind: input, shape index: {}]
  %s3 = inlined_call_operand.hbm [shape: f32[2,8,256], index: 3, kind: output, shape index: {}]
  %s4 = sld [smem:[#allocation0]]
  $region45: #{tpu_custom_call.1} parent=0
    _
  %s6 = ssub.s32 1, %s4
  %s7 = scalar_select 0, %s6, %s4
  $region1: #{tpu_custom_call.1} parent=0
    #allocation2 [shape = 'u8[16384]{0}', space=vmem, size = 0x4000, scoped, tag = 'output window, operand 0']
    #allocation3 [shape = 's32[2]{0}', space=sflag, size = 0x8, scoped, tag = 'scoped memory for tpu_custom_call.1']
    %8 = vsyncpa [#allocation3], 0
    %s9 = scalar_lea.sflag [#allocation3], 1
    %10 = vsyncpa %s9, 0
    loop: start=0, step=1, limit=4
    $region2: #{tpu_custom_call.1} parent=1 // loop_pre_header
      _
    $region3: #{tpu_custom_call.1} parent=1 // loop_header
      %s12 = sphi 0, %s16
      %p13 = scmp.ge.s32.totalorder %s12, 4
      %s20 = sphi 0, %s20
      %s22 = sphi 0, %s20
      %s23 = sphi 0, %s22
      %s37 = sphi 0, %s23
      %s41 = sphi 0, %s41
      %s43 = sphi 0, %s41
      %s44 = sphi 0, %s43
      %s58 = sphi 0, %s44
      %s64 = sphi 0, %s66
      %s67 = sphi 0, %s64
      %s68 = sphi 0, %s67
      %s84 = sphi 0, %s68
      %s90 = sphi 0, %s92
      %s93 = sphi 0, %s90
      %s94 = sphi 0, %s93
      %s110 = sphi 0, %s94
    $region4: #{tpu_custom_call.1} parent=1 // loop_header_branch
      %15 = sbr.rel (%p13) target = $region8
    $region5: #{tpu_custom_call.1} parent=1 // loop_body
      %s17 = ssub.s32 %s12, 1
      %s18 = ssub.s32 %s12, 2
      %s19 = sadd.s32 %s12, 1
      %s21 = sadd.s32 %s20, 1
      %p24 = scmp.eq.s32.totalorder %s12, 1
      %p25 = scmp.ne.s32.totalorder %s20, %s22
      %p26 = scmp.eq.s32.totalorder %s12, 0
      %p27 = por %p25, %p26
      %p28 = scmp.ne.s32.totalorder %s20, %s22
      %p29 = scmp.eq.s32.totalorder %s17, 1
      %p30 = por %p28, %p29
      %p31 = scmp.ne.s32.totalorder %s22, %s23
      %p32 = scmp.eq.s32.totalorder %s17, 0
      %p33 = por %p31, %p32
      %p34 = scmp.ne.s32.totalorder %s22, %s23
      %p35 = scmp.eq.s32.totalorder %s18, 1
      %p36 = por %p34, %p35
      %p38 = scmp.ne.s32.totalorder %s23, %s37
      %p39 = scmp.eq.s32.totalorder %s18, 0
      %p40 = por %p38, %p39
      %s42 = sadd.s32 %s41, 1
      %p45 = scmp.eq.s32.totalorder %s12, 1
      %p46 = scmp.ne.s32.totalorder %s41, %s43
      %p47 = scmp.eq.s32.totalorder %s12, 0
      %p48 = por %p46, %p47
      %p49 = scmp.ne.s32.totalorder %s41, %s43
      %p50 = scmp.eq.s32.totalorder %s17, 1
      %p51 = por %p49, %p50
      %p52 = scmp.ne.s32.totalorder %s43, %s44
      %p53 = scmp.eq.s32.totalorder %s17, 0
      %p54 = por %p52, %p53
      %p55 = scmp.ne.s32.totalorder %s43, %s44
      %p56 = scmp.eq.s32.totalorder %s18, 1
      %p57 = por %p55, %p56
      %p59 = scmp.ne.s32.totalorder %s44, %s58
      %p60 = scmp.eq.s32.totalorder %s18, 0
      %p61 = por %p59, %p60
      %s62 = ssub.s32 %s12, %s19
      %p63 = scmp.eq.s32.totalorder %s62, 0
      %s65 = sadd.s32 %s64, 1
      %s66 = scalar_select %p63, %s64, %s65
      %p69 = pneg %p63
      %p70 = scmp.eq.s32.totalorder %s12, 1
      %p71 = por %p69, %p70
      %p72 = scmp.ne.s32.totalorder %s64, %s67
      %p73 = scmp.eq.s32.totalorder %s12, 0
      %p74 = por %p72, %p73
      %p75 = scmp.ne.s32.totalorder %s64, %s67
      %p76 = scmp.eq.s32.totalorder %s17, 1
      %p77 = por %p75, %p76
      %p78 = scmp.ne.s32.totalorder %s67, %s68
      %p79 = scmp.eq.s32.totalorder %s17, 0
      %p80 = por %p78, %p79
      %p81 = scmp.ne.s32.totalorder %s67, %s68
      %p82 = scmp.eq.s32.totalorder %s18, 1
      %p83 = por %p81, %p82
      %p85 = scmp.ne.s32.totalorder %s68, %s84
      %p86 = scmp.eq.s32.totalorder %s18, 0
      %p87 = por %p85, %p86
      %s88 = ssub.s32 %s12, %s19
      %p89 = scmp.eq.s32.totalorder %s88, 0
      %s91 = sadd.s32 %s90, 1
      %s92 = scalar_select %p89, %s90, %s91
      %p95 = pneg %p89
      %p96 = scmp.eq.s32.totalorder %s12, 1
      %p97 = por %p95, %p96
      %p98 = scmp.ne.s32.totalorder %s90, %s93
      %p99 = scmp.eq.s32.totalorder %s12, 0
      %p100 = por %p98, %p99
      %p101 = scmp.ne.s32.totalorder %s90, %s93
      %p102 = scmp.eq.s32.totalorder %s17, 1
      %p103 = por %p101, %p102
      %p104 = scmp.ne.s32.totalorder %s93, %s94
      %p105 = scmp.eq.s32.totalorder %s17, 0
      %p106 = por %p104, %p105
      %p107 = scmp.ne.s32.totalorder %s93, %s94
      %p108 = scmp.eq.s32.totalorder %s18, 1
      %p109 = por %p107, %p108
      %p111 = scmp.ne.s32.totalorder %s94, %s110
      %p112 = scmp.eq.s32.totalorder %s18, 0
      %p113 = por %p111, %p112
      %p114 = scmp.le.s32.totalorder 1, %s12
      %p115 = scmp.lt.s32.totalorder %s12, 3
      %p116 = pnand %p114, %p115
      %p117 = pneg %p116
      // Predicated region
      $region9: #{tpu_custom_call.1} parent=5 // pred_check
        _
      $region10: #{tpu_custom_call.1} parent=5 // pred_check_branch
        %119 = sbr.rel (%p116) target = $region12
      $region11: #{tpu_custom_call.1} parent=5 // pred_region
        %s120 = ssub.s32 %s12, 1
        // Predicated region
        $region13: #{tpu_custom_call.1} parent=11 // pred_check
          %p121 = pneg %p33
        $region14: #{tpu_custom_call.1} parent=11 // pred_check_branch
          %123 = sbr.rel (%p121) target = $region16
        $region15: #{tpu_custom_call.1} parent=11 // pred_region
          _
        $region16: #{tpu_custom_call.1} parent=11 // pred_fallthru
          _
        // Predicated region
        $region17: #{tpu_custom_call.1} parent=11 // pred_check
          %p124 = pneg %p54
        $region18: #{tpu_custom_call.1} parent=11 // pred_check_branch
          %126 = sbr.rel (%p124) target = $region20
        $region19: #{tpu_custom_call.1} parent=11 // pred_region
          _
        $region20: #{tpu_custom_call.1} parent=11 // pred_fallthru
          _
      $region12: #{tpu_custom_call.1} parent=5 // pred_fallthru
        _
      %p127 = scmp.lt.s32.totalorder %s12, 2
      // Predicated region
      $region21: #{tpu_custom_call.1} parent=5 // pred_check
        %p128 = pneg %p127
      $region22: #{tpu_custom_call.1} parent=5 // pred_check_branch
        %130 = sbr.rel (%p128) target = $region24
      $region23: #{tpu_custom_call.1} parent=5 // pred_region
        // Predicated region
        $region25: #{tpu_custom_call.1} parent=23 // pred_check
          %p131 = pneg %p74
        $region26: #{tpu_custom_call.1} parent=23 // pred_check_branch
          %133 = sbr.rel (%p131) target = $region28
        $region27: #{tpu_custom_call.1} parent=23 // pred_region
          %p134 = scmp.lt.s32.totalorder %s12, 1
          %s135 = scalar_select %p134, %s12, 1
          %s136 = smul.addr %s135, 3
          %s137 = smul.addr %s136, 4
          %s138 = scalar_lea.vmem %s2, %s137
        $region28: #{tpu_custom_call.1} parent=23 // pred_fallthru
          _
      $region24: #{tpu_custom_call.1} parent=5 // pred_fallthru
        _
      %p139 = scmp.le.s32.totalorder 1, %s12
      %p140 = scmp.lt.s32.totalorder %s12, 3
      %p141 = pnand %p139, %p140
      %p142 = pneg %p141
      // Predicated region
      $region29: #{tpu_custom_call.1} parent=5 // pred_check
        _
      $region30: #{tpu_custom_call.1} parent=5 // pred_check_branch
        %144 = sbr.rel (%p141) target = $region32
      $region31: #{tpu_custom_call.1} parent=5 // pred_region
        %s145 = ssub.s32 %s12, 1
        %p146 = pneg %p33
        %p147 = pneg %p30
        %p148 = pneg %p54
        %p149 = pneg %p51
        %p150 = scmp.lt.s32.totalorder %s17, 1
        %s151 = scalar_select %p150, %s17, 1
        %s152 = smul.addr %s151, 3
        %s153 = smul.addr %s152, 4
        %s154 = scalar_lea.vmem %s2, %s153
        %p155 = pneg %p80
        %p156 = pneg %p77
        %p157 = pneg %p106
        %p158 = pneg %p103
        %s159 = sand.u32 %s93, 1
        %s160 = scalar_lea.sflag [#allocation3], %s159
        %s161 = sand.u32 %s93, 1
        %s162 = smul.addr %s161, 16
        %s163 = scalar_lea.vmem [#allocation2], %s162
        %p164 = scmp.lt.s32.totalorder %s17, 1
        %s165 = scalar_select %p164, %s17, 1
        %s166 = smul.addr %s165, 3
        %s167 = smul.addr %s166, 4
        %s168 = scalar_lea.vmem %s2, %s167
        %v169 = vld [vmem:[%s168] sm:$0xff]
        %v170 = vld [vmem:[%s0] sm:$0xff]
        %v171 = vld [vmem:[%s168] sm:$0xff]
        %v172 = vld [vmem:[%s168 + $0x8] sm:$0xf]
        %s173 = scalar_lea.vmem %s0, 8
        %v174 = vld [vmem:[%s173] sm:$0xff]
        %v177 = vcombine.high %v171, %v171
        %178 = vrot.lane.b32.xlu0 %v171, 127
        %v179 = vpop.permute.xlu0 %178
        %180 = vrot.lane.b32.xlu0 %v177, 127
        %v181 = vpop.permute.xlu0 %180
        %182 = vrot.lane.b32.xlu0 %v172, 127
        %v183 = vpop.permute.xlu0 %182
        %vm184 = vcmask 1039360
        %v185 = vsel %vm184, %v179, %v181
        %v186 = vsel %vm184, %v181, %v183
        %vm187 = vcmask 31744
        %v189 = vsel %vm187, %v174, 0
        %vm191 = vcmask 1043456
        %v192 = vsel %vm191, %v185, 0
        %v194 = vsel %vm191, %v186, 0
        %196 = vmatprep.subr.mxu0 %v194
        %197 = vmatpush1.msra.mxu0 %v192
        %198 = vmatprep.subr.mxu0 0.0
        %199 = vmatpush1.msra.mxu0 0.0
        %200 = vmatprep.subr.mxu0 0.0
        %201 = vmatpush1.msra.mxu0 0.0
        %202 = vmatprep.subr.mxu0 0.0
        %203 = vmatpush1.msra.mxu0 0.0
        %204 = vmatprep.subr.mxu0 0.0
        %205 = vmatpush1.msra.mxu0 0.0
        %206 = vmatprep.subr.mxu0 0.0
        %207 = vmatpush1.msra.mxu0 0.0
        %208 = vmatprep.subr.mxu0 0.0
        %209 = vmatpush1.msra.mxu0 0.0
        %210 = vmatprep.subr.mxu0 0.0
        %211 = vmatpush1.msra.mxu0 0.0
        %212 = vmatprep.subr.mxu0 0.0
        %213 = vmatpush1.msra.mxu0 0.0
        %214 = vmatprep.subr.mxu0 0.0
        %215 = vmatpush1.msra.mxu0 0.0
        %216 = vmatprep.subr.mxu0 0.0
        %217 = vmatpush1.msra.mxu0 0.0
        %218 = vmatprep.subr.mxu0 0.0
        %219 = vmatpush1.msra.mxu0 0.0
        %220 = vmatprep.subr.mxu0 0.0
        %221 = vmatpush1.msra.mxu0 0.0
        %222 = vmatprep.subr.mxu0 0.0
        %223 = vmatpush1.msra.mxu0 0.0
        %224 = vmatprep.subr.mxu0 0.0
        %225 = vmatpush1.msra.mxu0 0.0
        %226 = vmatprep.subr.mxu0 0.0
        %227 = vmatpush1.msra.mxu0 0.0
        %228 = vmatprep.subr.mxu0 0.0
        %229 = vmatpush1.msra.mxu0 0.0
        %230 = vmatprep.subr.mxu0 0.0
        %231 = vmatpush1.msra.mxu0 0.0
        %232 = vmatprep.subr.mxu0 0.0
        %233 = vmatpush1.msra.mxu0 0.0
        %234 = vmatprep.subr.mxu0 0.0
        %235 = vmatpush1.msra.mxu0 0.0
        %236 = vmatprep.subr.mxu0 0.0
        %237 = vmatpush1.msra.mxu0 0.0
        %238 = vmatprep.subr.mxu0 0.0
        %239 = vmatpush1.msra.mxu0 0.0
        %240 = vmatprep.subr.mxu0 0.0
        %241 = vmatpush1.msra.mxu0 0.0
        %242 = vmatprep.subr.mxu0 0.0
        %243 = vmatpush1.msra.mxu0 0.0
        %244 = vmatprep.subr.mxu0 0.0
        %245 = vmatpush1.msra.mxu0 0.0
        %246 = vmatprep.subr.mxu0 0.0
        %247 = vmatpush1.msra.mxu0 0.0
        %248 = vmatprep.subr.mxu0 0.0
        %249 = vmatpush1.msra.mxu0 0.0
        %250 = vmatprep.subr.mxu0 0.0
        %251 = vmatpush1.msra.mxu0 0.0
        %252 = vmatprep.subr.mxu0 0.0
        %253 = vmatpush1.msra.mxu0 0.0
        %254 = vmatprep.subr.mxu0 0.0
        %255 = vmatpush1.msra.mxu0 0.0
        %256 = vmatprep.subr.mxu0 0.0
        %257 = vmatpush1.msra.mxu0 0.0
        %258 = vmatprep.subr.mxu0 0.0
        %259 = vmatpush1.msra.mxu0 0.0
        %260 = vmatprep.mubr.f32.mxu0 0.0
        %261 = vmatmul.mubr.f32.gmra.mrb[0].mxu0 %v189
        %v262 = vpop.f32.mrb[0].mxu0
        %v263 = vadd.f32 0.0, %v262
        %v264 = vpop.f32.mrb[0].mxu0
        %v265 = vadd.f32 0.0, %v264
        %266 = vdwg.mxu0
        %v268 = vcombine.high %v169, %v169
        %v270 = vsel %vm187, %v170, 0
        %v272 = vsel %vm191, %v169, 0
        %v274 = vsel %vm191, %v268, 0
        %276 = vmatprep.subr.mxu0 %v274
        %277 = vmatpush1.msra.mxu0 %v272
        %278 = vmatprep.subr.mxu0 0.0
        %279 = vmatpush1.msra.mxu0 0.0
        %280 = vmatprep.subr.mxu0 0.0
        %281 = vmatpush1.msra.mxu0 0.0
        %282 = vmatprep.subr.mxu0 0.0
        %283 = vmatpush1.msra.mxu0 0.0
        %284 = vmatprep.subr.mxu0 0.0
        %285 = vmatpush1.msra.mxu0 0.0
        %286 = vmatprep.subr.mxu0 0.0
        %287 = vmatpush1.msra.mxu0 0.0
        %288 = vmatprep.subr.mxu0 0.0
        %289 = vmatpush1.msra.mxu0 0.0
        %290 = vmatprep.subr.mxu0 0.0
        %291 = vmatpush1.msra.mxu0 0.0
        %292 = vmatprep.subr.mxu0 0.0
        %293 = vmatpush1.msra.mxu0 0.0
        %294 = vmatprep.subr.mxu0 0.0
        %295 = vmatpush1.msra.mxu0 0.0
        %296 = vmatprep.subr.mxu0 0.0
        %297 = vmatpush1.msra.mxu0 0.0
        %298 = vmatprep.subr.mxu0 0.0
        %299 = vmatpush1.msra.mxu0 0.0
        %300 = vmatprep.subr.mxu0 0.0
        %301 = vmatpush1.msra.mxu0 0.0
        %302 = vmatprep.subr.mxu0 0.0
        %303 = vmatpush1.msra.mxu0 0.0
        %304 = vmatprep.subr.mxu0 0.0
        %305 = vmatpush1.msra.mxu0 0.0
        %306 = vmatprep.subr.mxu0 0.0
        %307 = vmatpush1.msra.mxu0 0.0
        %308 = vmatprep.subr.mxu0 0.0
        %309 = vmatpush1.msra.mxu0 0.0
        %310 = vmatprep.subr.mxu0 0.0
        %311 = vmatpush1.msra.mxu0 0.0
        %312 = vmatprep.subr.mxu0 0.0
        %313 = vmatpush1.msra.mxu0 0.0
        %314 = vmatprep.subr.mxu0 0.0
        %315 = vmatpush1.msra.mxu0 0.0
        %316 = vmatprep.subr.mxu0 0.0
        %317 = vmatpush1.msra.mxu0 0.0
        %318 = vmatprep.subr.mxu0 0.0
        %319 = vmatpush1.msra.mxu0 0.0
        %320 = vmatprep.subr.mxu0 0.0
        %321 = vmatpush1.msra.mxu0 0.0
        %322 = vmatprep.subr.mxu0 0.0
        %323 = vmatpush1.msra.mxu0 0.0
        %324 = vmatprep.subr.mxu0 0.0
        %325 = vmatpush1.msra.mxu0 0.0
        %326 = vmatprep.subr.mxu0 0.0
        %327 = vmatpush1.msra.mxu0 0.0
        %328 = vmatprep.subr.mxu0 0.0
        %329 = vmatpush1.msra.mxu0 0.0
        %330 = vmatprep.subr.mxu0 0.0
        %331 = vmatpush1.msra.mxu0 0.0
        %332 = vmatprep.subr.mxu0 0.0
        %333 = vmatpush1.msra.mxu0 0.0
        %334 = vmatprep.subr.mxu0 0.0
        %335 = vmatpush1.msra.mxu0 0.0
        %336 = vmatprep.subr.mxu0 0.0
        %337 = vmatpush1.msra.mxu0 0.0
        %338 = vmatprep.subr.mxu0 0.0
        %339 = vmatpush1.msra.mxu0 0.0
        %340 = vmatprep.mubr.f32.mxu0 0.0
        %341 = vmatmul.mubr.f32.gmra.mrb[0].mxu0 %v270
        %v342 = vpop.f32.mrb[0].mxu0
        %v343 = vadd.f32 %v263, %v342
        %v344 = vpop.f32.mrb[0].mxu0
        %v345 = vadd.f32 %v265, %v344
        %346 = vdwg.mxu0
        %v347 = vld [vmem:[%s168] sm:$0xff]
        %v348 = vld [vmem:[%s168 + $0x8] sm:$0xf]
        %s349 = scalar_lea.vmem %s0, 16
        %v350 = vld [vmem:[%s349] sm:$0xff]
        %v353 = vcombine.high %v347, %v347
        %354 = vrot.lane.b32.xlu0 %v347, 126
        %v355 = vpop.permute.xlu0 %354
        %356 = vrot.lane.b32.xlu0 %v353, 126
        %v357 = vpop.permute.xlu0 %356
        %358 = vrot.lane.b32.xlu0 %v348, 126
        %v359 = vpop.permute.xlu0 %358
        %vm360 = vcmask 1031168
        %v361 = vsel %vm360, %v355, %v357
        %v362 = vsel %vm360, %v357, %v359
        %v364 = vsel %vm187, %v350, 0
        %v366 = vsel %vm191, %v361, 0
        %v368 = vsel %vm191, %v362, 0
        %370 = vmatprep.subr.mxu0 %v368
        %371 = vmatpush1.msra.mxu0 %v366
        %372 = vmatprep.subr.mxu0 0.0
        %373 = vmatpush1.msra.mxu0 0.0
        %374 = vmatprep.subr.mxu0 0.0
        %375 = vmatpush1.msra.mxu0 0.0
        %376 = vmatprep.subr.mxu0 0.0
        %377 = vmatpush1.msra.mxu0 0.0
        %378 = vmatprep.subr.mxu0 0.0
        %379 = vmatpush1.msra.mxu0 0.0
        %380 = vmatprep.subr.mxu0 0.0
        %381 = vmatpush1.msra.mxu0 0.0
        %382 = vmatprep.subr.mxu0 0.0
        %383 = vmatpush1.msra.mxu0 0.0
        %384 = vmatprep.subr.mxu0 0.0
        %385 = vmatpush1.msra.mxu0 0.0
        %386 = vmatprep.subr.mxu0 0.0
        %387 = vmatpush1.msra.mxu0 0.0
        %388 = vmatprep.subr.mxu0 0.0
        %389 = vmatpush1.msra.mxu0 0.0
        %390 = vmatprep.subr.mxu0 0.0
        %391 = vmatpush1.msra.mxu0 0.0
        %392 = vmatprep.subr.mxu0 0.0
        %393 = vmatpush1.msra.mxu0 0.0
        %394 = vmatprep.subr.mxu0 0.0
        %395 = vmatpush1.msra.mxu0 0.0
        %396 = vmatprep.subr.mxu0 0.0
        %397 = vmatpush1.msra.mxu0 0.0
        %398 = vmatprep.subr.mxu0 0.0
        %399 = vmatpush1.msra.mxu0 0.0
        %400 = vmatprep.subr.mxu0 0.0
        %401 = vmatpush1.msra.mxu0 0.0
        %402 = vmatprep.subr.mxu0 0.0
        %403 = vmatpush1.msra.mxu0 0.0
        %404 = vmatprep.subr.mxu0 0.0
        %405 = vmatpush1.msra.mxu0 0.0
        %406 = vmatprep.subr.mxu0 0.0
        %407 = vmatpush1.msra.mxu0 0.0
        %408 = vmatprep.subr.mxu0 0.0
        %409 = vmatpush1.msra.mxu0 0.0
        %410 = vmatprep.subr.mxu0 0.0
        %411 = vmatpush1.msra.mxu0 0.0
        %412 = vmatprep.subr.mxu0 0.0
        %413 = vmatpush1.msra.mxu0 0.0
        %414 = vmatprep.subr.mxu0 0.0
        %415 = vmatpush1.msra.mxu0 0.0
        %416 = vmatprep.subr.mxu0 0.0
        %417 = vmatpush1.msra.mxu0 0.0
        %418 = vmatprep.subr.mxu0 0.0
        %419 = vmatpush1.msra.mxu0 0.0
        %420 = vmatprep.subr.mxu0 0.0
        %421 = vmatpush1.msra.mxu0 0.0
        %422 = vmatprep.subr.mxu0 0.0
        %423 = vmatpush1.msra.mxu0 0.0
        %424 = vmatprep.subr.mxu0 0.0
        %425 = vmatpush1.msra.mxu0 0.0
        %426 = vmatprep.subr.mxu0 0.0
        %427 = vmatpush1.msra.mxu0 0.0
        %428 = vmatprep.subr.mxu0 0.0
        %429 = vmatpush1.msra.mxu0 0.0
        %430 = vmatprep.subr.mxu0 0.0
        %431 = vmatpush1.msra.mxu0 0.0
        %432 = vmatprep.subr.mxu0 0.0
        %433 = vmatpush1.msra.mxu0 0.0
        %434 = vmatprep.mubr.f32.mxu0 0.0
        %435 = vmatmul.mubr.f32.gmra.mrb[0].mxu0 %v364
        %v436 = vpop.f32.mrb[0].mxu0
        %v437 = vadd.f32 0.0, %v436
        %v438 = vpop.f32.mrb[0].mxu0
        %v439 = vadd.f32 0.0, %v438
        %440 = vdwg.mxu0
        %v441 = vadd.f32 %v343, %v437
        %v442 = vadd.f32 %v345, %v439
        %v443 = vld [vmem:[%s168] sm:$0xff]
        %v444 = vld [vmem:[%s168 + $0x8] sm:$0xf]
        %s445 = scalar_lea.vmem %s0, 24
        %v446 = vld [vmem:[%s445] sm:$0xff]
        %v449 = vcombine.high %v443, %v443
        %450 = vrot.lane.b32.xlu0 %v443, 112
        %v451 = vpop.permute.xlu0 %450
        %452 = vrot.lane.b32.xlu0 %v449, 112
        %v453 = vpop.permute.xlu0 %452
        %454 = vrot.lane.b32.xlu0 %v444, 112
        %v455 = vpop.permute.xlu0 %454
        %vm456 = vcmask 916480
        %v457 = vsel %vm456, %v451, %v453
        %v458 = vsel %vm456, %v453, %v455
        %v460 = vsel %vm187, %v446, 0
        %v462 = vsel %vm191, %v457, 0
        %v464 = vsel %vm191, %v458, 0
        %466 = vmatprep.subr.mxu0 %v464
        %467 = vmatpush1.msra.mxu0 %v462
        %468 = vmatprep.subr.mxu0 0.0
        %469 = vmatpush1.msra.mxu0 0.0
        %470 = vmatprep.subr.mxu0 0.0
        %471 = vmatpush1.msra.mxu0 0.0
        %472 = vmatprep.subr.mxu0 0.0
        %473 = vmatpush1.msra.mxu0 0.0
        %474 = vmatprep.subr.mxu0 0.0
        %475 = vmatpush1.msra.mxu0 0.0
        %476 = vmatprep.subr.mxu0 0.0
        %477 = vmatpush1.msra.mxu0 0.0
        %478 = vmatprep.subr.mxu0 0.0
        %479 = vmatpush1.msra.mxu0 0.0
        %480 = vmatprep.subr.mxu0 0.0
        %481 = vmatpush1.msra.mxu0 0.0
        %482 = vmatprep.subr.mxu0 0.0
        %483 = vmatpush1.msra.mxu0 0.0
        %484 = vmatprep.subr.mxu0 0.0
        %485 = vmatpush1.msra.mxu0 0.0
        %486 = vmatprep.subr.mxu0 0.0
        %487 = vmatpush1.msra.mxu0 0.0
        %488 = vmatprep.subr.mxu0 0.0
        %489 = vmatpush1.msra.mxu0 0.0
        %490 = vmatprep.subr.mxu0 0.0
        %491 = vmatpush1.msra.mxu0 0.0
        %492 = vmatprep.subr.mxu0 0.0
        %493 = vmatpush1.msra.mxu0 0.0
        %494 = vmatprep.subr.mxu0 0.0
        %495 = vmatpush1.msra.mxu0 0.0
        %496 = vmatprep.subr.mxu0 0.0
        %497 = vmatpush1.msra.mxu0 0.0
        %498 = vmatprep.subr.mxu0 0.0
        %499 = vmatpush1.msra.mxu0 0.0
        %500 = vmatprep.subr.mxu0 0.0
        %501 = vmatpush1.msra.mxu0 0.0
        %502 = vmatprep.subr.mxu0 0.0
        %503 = vmatpush1.msra.mxu0 0.0
        %504 = vmatprep.subr.mxu0 0.0
        %505 = vmatpush1.msra.mxu0 0.0
        %506 = vmatprep.subr.mxu0 0.0
        %507 = vmatpush1.msra.mxu0 0.0
        %508 = vmatprep.subr.mxu0 0.0
        %509 = vmatpush1.msra.mxu0 0.0
        %510 = vmatprep.subr.mxu0 0.0
        %511 = vmatpush1.msra.mxu0 0.0
        %512 = vmatprep.subr.mxu0 0.0
        %513 = vmatpush1.msra.mxu0 0.0
        %514 = vmatprep.subr.mxu0 0.0
        %515 = vmatpush1.msra.mxu0 0.0
        %516 = vmatprep.subr.mxu0 0.0
        %517 = vmatpush1.msra.mxu0 0.0
        %518 = vmatprep.subr.mxu0 0.0
        %519 = vmatpush1.msra.mxu0 0.0
        %520 = vmatprep.subr.mxu0 0.0
        %521 = vmatpush1.msra.mxu0 0.0
        %522 = vmatprep.subr.mxu0 0.0
        %523 = vmatpush1.msra.mxu0 0.0
        %524 = vmatprep.subr.mxu0 0.0
        %525 = vmatpush1.msra.mxu0 0.0
        %526 = vmatprep.subr.mxu0 0.0
        %527 = vmatpush1.msra.mxu0 0.0
        %528 = vmatprep.subr.mxu0 0.0
        %529 = vmatpush1.msra.mxu0 0.0
        %530 = vmatprep.mubr.f32.mxu0 0.0
        %531 = vmatmul.mubr.f32.gmra.mrb[0].mxu0 %v460
        %v532 = vpop.f32.mrb[0].mxu0
        %v533 = vadd.f32 0.0, %v532
        %v534 = vpop.f32.mrb[0].mxu0
        %v535 = vadd.f32 0.0, %v534
        %536 = vdwg.mxu0
        %v537 = vadd.f32 %v441, %v533
        %v538 = vadd.f32 %v442, %v535
        %v539 = vld [vmem:[%s168] sm:$0xff]
        %v540 = vld [vmem:[%s168 + $0x8] sm:$0xf]
        %s541 = scalar_lea.vmem %s0, 32
        %v542 = vld [vmem:[%s541] sm:$0xff]
        %v545 = vcombine.high %v539, %v539
        %546 = vrot.lane.b32.xlu0 %v539, 111
        %v547 = vpop.permute.xlu0 %546
        %548 = vrot.lane.b32.xlu0 %v545, 111
        %v549 = vpop.permute.xlu0 %548
        %550 = vrot.lane.b32.xlu0 %v540, 111
        %v551 = vpop.permute.xlu0 %550
        %vm552 = vcmask 908288
        %v553 = vsel %vm552, %v547, %v549
        %v554 = vsel %vm552, %v549, %v551
        %v556 = vsel %vm187, %v542, 0
        %v558 = vsel %vm191, %v553, 0
        %v560 = vsel %vm191, %v554, 0
        %562 = vmatprep.subr.mxu0 %v560
        %563 = vmatpush1.msra.mxu0 %v558
        %564 = vmatprep.subr.mxu0 0.0
        %565 = vmatpush1.msra.mxu0 0.0
        %566 = vmatprep.subr.mxu0 0.0
        %567 = vmatpush1.msra.mxu0 0.0
        %568 = vmatprep.subr.mxu0 0.0
        %569 = vmatpush1.msra.mxu0 0.0
        %570 = vmatprep.subr.mxu0 0.0
        %571 = vmatpush1.msra.mxu0 0.0
        %572 = vmatprep.subr.mxu0 0.0
        %573 = vmatpush1.msra.mxu0 0.0
        %574 = vmatprep.subr.mxu0 0.0
        %575 = vmatpush1.msra.mxu0 0.0
        %576 = vmatprep.subr.mxu0 0.0
        %577 = vmatpush1.msra.mxu0 0.0
        %578 = vmatprep.subr.mxu0 0.0
        %579 = vmatpush1.msra.mxu0 0.0
        %580 = vmatprep.subr.mxu0 0.0
        %581 = vmatpush1.msra.mxu0 0.0
        %582 = vmatprep.subr.mxu0 0.0
        %583 = vmatpush1.msra.mxu0 0.0
        %584 = vmatprep.subr.mxu0 0.0
        %585 = vmatpush1.msra.mxu0 0.0
        %586 = vmatprep.subr.mxu0 0.0
        %587 = vmatpush1.msra.mxu0 0.0
        %588 = vmatprep.subr.mxu0 0.0
        %589 = vmatpush1.msra.mxu0 0.0
        %590 = vmatprep.subr.mxu0 0.0
        %591 = vmatpush1.msra.mxu0 0.0
        %592 = vmatprep.subr.mxu0 0.0
        %593 = vmatpush1.msra.mxu0 0.0
        %594 = vmatprep.subr.mxu0 0.0
        %595 = vmatpush1.msra.mxu0 0.0
        %596 = vmatprep.subr.mxu0 0.0
        %597 = vmatpush1.msra.mxu0 0.0
        %598 = vmatprep.subr.mxu0 0.0
        %599 = vmatpush1.msra.mxu0 0.0
        %600 = vmatprep.subr.mxu0 0.0
        %601 = vmatpush1.msra.mxu0 0.0
        %602 = vmatprep.subr.mxu0 0.0
        %603 = vmatpush1.msra.mxu0 0.0
        %604 = vmatprep.subr.mxu0 0.0
        %605 = vmatpush1.msra.mxu0 0.0
        %606 = vmatprep.subr.mxu0 0.0
        %607 = vmatpush1.msra.mxu0 0.0
        %608 = vmatprep.subr.mxu0 0.0
        %609 = vmatpush1.msra.mxu0 0.0
        %610 = vmatprep.subr.mxu0 0.0
        %611 = vmatpush1.msra.mxu0 0.0
        %612 = vmatprep.subr.mxu0 0.0
        %613 = vmatpush1.msra.mxu0 0.0
        %614 = vmatprep.subr.mxu0 0.0
        %615 = vmatpush1.msra.mxu0 0.0
        %616 = vmatprep.subr.mxu0 0.0
        %617 = vmatpush1.msra.mxu0 0.0
        %618 = vmatprep.subr.mxu0 0.0
        %619 = vmatpush1.msra.mxu0 0.0
        %620 = vmatprep.subr.mxu0 0.0
        %621 = vmatpush1.msra.mxu0 0.0
        %622 = vmatprep.subr.mxu0 0.0
        %623 = vmatpush1.msra.mxu0 0.0
        %624 = vmatprep.subr.mxu0 0.0
        %625 = vmatpush1.msra.mxu0 0.0
        %626 = vmatprep.mubr.f32.mxu0 0.0
        %627 = vmatmul.mubr.f32.gmra.mrb[0].mxu0 %v556
        %v628 = vpop.f32.mrb[0].mxu0
        %v629 = vadd.f32 0.0, %v628
        %v630 = vpop.f32.mrb[0].mxu0
        %v631 = vadd.f32 0.0, %v630
        %632 = vdwg.mxu0
        %v633 = vadd.f32 %v537, %v629
        %v634 = vadd.f32 %v538, %v631
        %v635 = vld [vmem:[%s168] sm:$0xff]
        %v636 = vld [vmem:[%s168 + $0x8] sm:$0xf]
        %s637 = scalar_lea.vmem %s0, 40
        %v638 = vld [vmem:[%s637] sm:$0xff]
        %v641 = vcombine.high %v635, %v635
        %642 = vrot.lane.b32.xlu0 %v635, 110
        %v643 = vpop.permute.xlu0 %642
        %644 = vrot.lane.b32.xlu0 %v641, 110
        %v645 = vpop.permute.xlu0 %644
        %646 = vrot.lane.b32.xlu0 %v636, 110
        %v647 = vpop.permute.xlu0 %646
        %vm648 = vcmask 900096
        %v649 = vsel %vm648, %v643, %v645
        %v650 = vsel %vm648, %v645, %v647
        %v652 = vsel %vm187, %v638, 0
        %v654 = vsel %vm191, %v649, 0
        %v656 = vsel %vm191, %v650, 0
        %658 = vmatprep.subr.mxu0 %v656
        %659 = vmatpush1.msra.mxu0 %v654
        %660 = vmatprep.subr.mxu0 0.0
        %661 = vmatpush1.msra.mxu0 0.0
        %662 = vmatprep.subr.mxu0 0.0
        %663 = vmatpush1.msra.mxu0 0.0
        %664 = vmatprep.subr.mxu0 0.0
        %665 = vmatpush1.msra.mxu0 0.0
        %666 = vmatprep.subr.mxu0 0.0
        %667 = vmatpush1.msra.mxu0 0.0
        %668 = vmatprep.subr.mxu0 0.0
        %669 = vmatpush1.msra.mxu0 0.0
        %670 = vmatprep.subr.mxu0 0.0
        %671 = vmatpush1.msra.mxu0 0.0
        %672 = vmatprep.subr.mxu0 0.0
        %673 = vmatpush1.msra.mxu0 0.0
        %674 = vmatprep.subr.mxu0 0.0
        %675 = vmatpush1.msra.mxu0 0.0
        %676 = vmatprep.subr.mxu0 0.0
        %677 = vmatpush1.msra.mxu0 0.0
        %678 = vmatprep.subr.mxu0 0.0
        %679 = vmatpush1.msra.mxu0 0.0
        %680 = vmatprep.subr.mxu0 0.0
        %681 = vmatpush1.msra.mxu0 0.0
        %682 = vmatprep.subr.mxu0 0.0
        %683 = vmatpush1.msra.mxu0 0.0
        %684 = vmatprep.subr.mxu0 0.0
        %685 = vmatpush1.msra.mxu0 0.0
        %686 = vmatprep.subr.mxu0 0.0
        %687 = vmatpush1.msra.mxu0 0.0
        %688 = vmatprep.subr.mxu0 0.0
        %689 = vmatpush1.msra.mxu0 0.0
        %690 = vmatprep.subr.mxu0 0.0
        %691 = vmatpush1.msra.mxu0 0.0
        %692 = vmatprep.subr.mxu0 0.0
        %693 = vmatpush1.msra.mxu0 0.0
        %694 = vmatprep.subr.mxu0 0.0
        %695 = vmatpush1.msra.mxu0 0.0
        %696 = vmatprep.subr.mxu0 0.0
        %697 = vmatpush1.msra.mxu0 0.0
        %698 = vmatprep.subr.mxu0 0.0
        %699 = vmatpush1.msra.mxu0 0.0
        %700 = vmatprep.subr.mxu0 0.0
        %701 = vmatpush1.msra.mxu0 0.0
        %702 = vmatprep.subr.mxu0 0.0
        %703 = vmatpush1.msra.mxu0 0.0
        %704 = vmatprep.subr.mxu0 0.0
        %705 = vmatpush1.msra.mxu0 0.0
        %706 = vmatprep.subr.mxu0 0.0
        %707 = vmatpush1.msra.mxu0 0.0
        %708 = vmatprep.subr.mxu0 0.0
        %709 = vmatpush1.msra.mxu0 0.0
        %710 = vmatprep.subr.mxu0 0.0
        %711 = vmatpush1.msra.mxu0 0.0
        %712 = vmatprep.subr.mxu0 0.0
        %713 = vmatpush1.msra.mxu0 0.0
        %714 = vmatprep.subr.mxu0 0.0
        %715 = vmatpush1.msra.mxu0 0.0
        %716 = vmatprep.subr.mxu0 0.0
        %717 = vmatpush1.msra.mxu0 0.0
        %718 = vmatprep.subr.mxu0 0.0
        %719 = vmatpush1.msra.mxu0 0.0
        %720 = vmatprep.subr.mxu0 0.0
        %721 = vmatpush1.msra.mxu0 0.0
        %722 = vmatprep.mubr.f32.mxu0 0.0
        %723 = vmatmul.mubr.f32.gmra.mrb[0].mxu0 %v652
        %v724 = vpop.f32.mrb[0].mxu0
        %v725 = vadd.f32 0.0, %v724
        %v726 = vpop.f32.mrb[0].mxu0
        %v727 = vadd.f32 0.0, %v726
        %728 = vdwg.mxu0
        %v729 = vadd.f32 %v633, %v725
        %v730 = vadd.f32 %v634, %v727
        %v731 = vld [vmem:[%s168] sm:$0xff]
        %v732 = vld [vmem:[%s168 + $0x8] sm:$0xf]
        %s733 = scalar_lea.vmem %s0, 48
        %v734 = vld [vmem:[%s733] sm:$0xff]
        %v737 = vcombine.high %v731, %v731
        %738 = vrot.lane.b32.xlu0 %v731, 96
        %v739 = vpop.permute.xlu0 %738
        %740 = vrot.lane.b32.xlu0 %v737, 96
        %v741 = vpop.permute.xlu0 %740
        %742 = vrot.lane.b32.xlu0 %v732, 96
        %v743 = vpop.permute.xlu0 %742
        %vm744 = vcmask 785408
        %v745 = vsel %vm744, %v739, %v741
        %v746 = vsel %vm744, %v741, %v743
        %v748 = vsel %vm187, %v734, 0
        %v750 = vsel %vm191, %v745, 0
        %v752 = vsel %vm191, %v746, 0
        %754 = vmatprep.subr.mxu0 %v752
        %755 = vmatpush1.msra.mxu0 %v750
        %756 = vmatprep.subr.mxu0 0.0
        %757 = vmatpush1.msra.mxu0 0.0
        %758 = vmatprep.subr.mxu0 0.0
        %759 = vmatpush1.msra.mxu0 0.0
        %760 = vmatprep.subr.mxu0 0.0
        %761 = vmatpush1.msra.mxu0 0.0
        %762 = vmatprep.subr.mxu0 0.0
        %763 = vmatpush1.msra.mxu0 0.0
        %764 = vmatprep.subr.mxu0 0.0
        %765 = vmatpush1.msra.mxu0 0.0
        %766 = vmatprep.subr.mxu0 0.0
        %767 = vmatpush1.msra.mxu0 0.0
        %768 = vmatprep.subr.mxu0 0.0
        %769 = vmatpush1.msra.mxu0 0.0
        %770 = vmatprep.subr.mxu0 0.0
        %771 = vmatpush1.msra.mxu0 0.0
        %772 = vmatprep.subr.mxu0 0.0
        %773 = vmatpush1.msra.mxu0 0.0
        %774 = vmatprep.subr.mxu0 0.0
        %775 = vmatpush1.msra.mxu0 0.0
        %776 = vmatprep.subr.mxu0 0.0
        %777 = vmatpush1.msra.mxu0 0.0
        %778 = vmatprep.subr.mxu0 0.0
        %779 = vmatpush1.msra.mxu0 0.0
        %780 = vmatprep.subr.mxu0 0.0
        %781 = vmatpush1.msra.mxu0 0.0
        %782 = vmatprep.subr.mxu0 0.0
        %783 = vmatpush1.msra.mxu0 0.0
        %784 = vmatprep.subr.mxu0 0.0
        %785 = vmatpush1.msra.mxu0 0.0
        %786 = vmatprep.subr.mxu0 0.0
        %787 = vmatpush1.msra.mxu0 0.0
        %788 = vmatprep.subr.mxu0 0.0
        %789 = vmatpush1.msra.mxu0 0.0
        %790 = vmatprep.subr.mxu0 0.0
        %791 = vmatpush1.msra.mxu0 0.0
        %792 = vmatprep.subr.mxu0 0.0
        %793 = vmatpush1.msra.mxu0 0.0
        %794 = vmatprep.subr.mxu0 0.0
        %795 = vmatpush1.msra.mxu0 0.0
        %796 = vmatprep.subr.mxu0 0.0
        %797 = vmatpush1.msra.mxu0 0.0
        %798 = vmatprep.subr.mxu0 0.0
        %799 = vmatpush1.msra.mxu0 0.0
        %800 = vmatprep.subr.mxu0 0.0
        %801 = vmatpush1.msra.mxu0 0.0
        %802 = vmatprep.subr.mxu0 0.0
        %803 = vmatpush1.msra.mxu0 0.0
        %804 = vmatprep.subr.mxu0 0.0
        %805 = vmatpush1.msra.mxu0 0.0
        %806 = vmatprep.subr.mxu0 0.0
        %807 = vmatpush1.msra.mxu0 0.0
        %808 = vmatprep.subr.mxu0 0.0
        %809 = vmatpush1.msra.mxu0 0.0
        %810 = vmatprep.subr.mxu0 0.0
        %811 = vmatpush1.msra.mxu0 0.0
        %812 = vmatprep.subr.mxu0 0.0
        %813 = vmatpush1.msra.mxu0 0.0
        %814 = vmatprep.subr.mxu0 0.0
        %815 = vmatpush1.msra.mxu0 0.0
        %816 = vmatprep.subr.mxu0 0.0
        %817 = vmatpush1.msra.mxu0 0.0
        %818 = vmatprep.mubr.f32.mxu0 0.0
        %819 = vmatmul.mubr.f32.gmra.mrb[0].mxu0 %v748
        %v820 = vpop.f32.mrb[0].mxu0
        %v821 = vadd.f32 0.0, %v820
        %v822 = vpop.f32.mrb[0].mxu0
        %v823 = vadd.f32 0.0, %v822
        %824 = vdwg.mxu0
        %v825 = vadd.f32 %v729, %v821
        %v826 = vadd.f32 %v730, %v823
        %v827 = vld [vmem:[%s168] sm:$0xff]
        %v828 = vld [vmem:[%s168 + $0x8] sm:$0xf]
        %s829 = scalar_lea.vmem %s0, 56
        %v830 = vld [vmem:[%s829] sm:$0xff]
        %v833 = vcombine.high %v827, %v827
        %834 = vrot.lane.b32.xlu0 %v827, 95
        %v835 = vpop.permute.xlu0 %834
        %836 = vrot.lane.b32.xlu0 %v833, 95
        %v837 = vpop.permute.xlu0 %836
        %838 = vrot.lane.b32.xlu0 %v828, 95
        %v839 = vpop.permute.xlu0 %838
        %vm840 = vcmask 777216
        %v841 = vsel %vm840, %v835, %v837
        %v842 = vsel %vm840, %v837, %v839
        %v844 = vsel %vm187, %v830, 0
        %v846 = vsel %vm191, %v841, 0
        %v848 = vsel %vm191, %v842, 0
        %850 = vmatprep.subr.mxu0 %v848
        %851 = vmatpush1.msra.mxu0 %v846
        %852 = vmatprep.subr.mxu0 0.0
        %853 = vmatpush1.msra.mxu0 0.0
        %854 = vmatprep.subr.mxu0 0.0
        %855 = vmatpush1.msra.mxu0 0.0
        %856 = vmatprep.subr.mxu0 0.0
        %857 = vmatpush1.msra.mxu0 0.0
        %858 = vmatprep.subr.mxu0 0.0
        %859 = vmatpush1.msra.mxu0 0.0
        %860 = vmatprep.subr.mxu0 0.0
        %861 = vmatpush1.msra.mxu0 0.0
        %862 = vmatprep.subr.mxu0 0.0
        %863 = vmatpush1.msra.mxu0 0.0
        %864 = vmatprep.subr.mxu0 0.0
        %865 = vmatpush1.msra.mxu0 0.0
        %866 = vmatprep.subr.mxu0 0.0
        %867 = vmatpush1.msra.mxu0 0.0
        %868 = vmatprep.subr.mxu0 0.0
        %869 = vmatpush1.msra.mxu0 0.0
        %870 = vmatprep.subr.mxu0 0.0
        %871 = vmatpush1.msra.mxu0 0.0
        %872 = vmatprep.subr.mxu0 0.0
        %873 = vmatpush1.msra.mxu0 0.0
        %874 = vmatprep.subr.mxu0 0.0
        %875 = vmatpush1.msra.mxu0 0.0
        %876 = vmatprep.subr.mxu0 0.0
        %877 = vmatpush1.msra.mxu0 0.0
        %878 = vmatprep.subr.mxu0 0.0
        %879 = vmatpush1.msra.mxu0 0.0
        %880 = vmatprep.subr.mxu0 0.0
        %881 = vmatpush1.msra.mxu0 0.0
        %882 = vmatprep.subr.mxu0 0.0
        %883 = vmatpush1.msra.mxu0 0.0
        %884 = vmatprep.subr.mxu0 0.0
        %885 = vmatpush1.msra.mxu0 0.0
        %886 = vmatprep.subr.mxu0 0.0
        %887 = vmatpush1.msra.mxu0 0.0
        %888 = vmatprep.subr.mxu0 0.0
        %889 = vmatpush1.msra.mxu0 0.0
        %890 = vmatprep.subr.mxu0 0.0
        %891 = vmatpush1.msra.mxu0 0.0
        %892 = vmatprep.subr.mxu0 0.0
        %893 = vmatpush1.msra.mxu0 0.0
        %894 = vmatprep.subr.mxu0 0.0
        %895 = vmatpush1.msra.mxu0 0.0
        %896 = vmatprep.subr.mxu0 0.0
        %897 = vmatpush1.msra.mxu0 0.0
        %898 = vmatprep.subr.mxu0 0.0
        %899 = vmatpush1.msra.mxu0 0.0
        %900 = vmatprep.subr.mxu0 0.0
        %901 = vmatpush1.msra.mxu0 0.0
        %902 = vmatprep.subr.mxu0 0.0
        %903 = vmatpush1.msra.mxu0 0.0
        %904 = vmatprep.subr.mxu0 0.0
        %905 = vmatpush1.msra.mxu0 0.0
        %906 = vmatprep.subr.mxu0 0.0
        %907 = vmatpush1.msra.mxu0 0.0
        %908 = vmatprep.subr.mxu0 0.0
        %909 = vmatpush1.msra.mxu0 0.0
        %910 = vmatprep.subr.mxu0 0.0
        %911 = vmatpush1.msra.mxu0 0.0
        %912 = vmatprep.subr.mxu0 0.0
        %913 = vmatpush1.msra.mxu0 0.0
        %914 = vmatprep.mubr.f32.mxu0 0.0
        %915 = vmatmul.mubr.f32.gmra.mrb[0].mxu0 %v844
        %v916 = vpop.f32.mrb[0].mxu0
        %v917 = vadd.f32 0.0, %v916
        %v918 = vpop.f32.mrb[0].mxu0
        %v919 = vadd.f32 0.0, %v918
        %920 = vdwg.mxu0
        %v921 = vadd.f32 %v825, %v917
        %v922 = vadd.f32 %v826, %v919
        %v923 = vld [vmem:[%s168] sm:$0xff]
        %v924 = vld [vmem:[%s168 + $0x8] sm:$0xf]
        %s925 = scalar_lea.vmem %s0, 64
        %v926 = vld [vmem:[%s925] sm:$0xff]
        %v929 = vcombine.high %v923, %v923
        %930 = vrot.lane.b32.xlu0 %v923, 94
        %v931 = vpop.permute.xlu0 %930
        %932 = vrot.lane.b32.xlu0 %v929, 94
        %v933 = vpop.permute.xlu0 %932
        %934 = vrot.lane.b32.xlu0 %v924, 94
        %v935 = vpop.permute.xlu0 %934
        %vm936 = vcmask 769024
        %v937 = vsel %vm936, %v931, %v933
        %v938 = vsel %vm936, %v933, %v935
        %v940 = vsel %vm187, %v926, 0
        %v942 = vsel %vm191, %v937, 0
        %v944 = vsel %vm191, %v938, 0
        %946 = vmatprep.subr.mxu0 %v944
        %947 = vmatpush1.msra.mxu0 %v942
        %948 = vmatprep.subr.mxu0 0.0
        %949 = vmatpush1.msra.mxu0 0.0
        %950 = vmatprep.subr.mxu0 0.0
        %951 = vmatpush1.msra.mxu0 0.0
        %952 = vmatprep.subr.mxu0 0.0
        %953 = vmatpush1.msra.mxu0 0.0
        %954 = vmatprep.subr.mxu0 0.0
        %955 = vmatpush1.msra.mxu0 0.0
        %956 = vmatprep.subr.mxu0 0.0
        %957 = vmatpush1.msra.mxu0 0.0
        %958 = vmatprep.subr.mxu0 0.0
        %959 = vmatpush1.msra.mxu0 0.0
        %960 = vmatprep.subr.mxu0 0.0
        %961 = vmatpush1.msra.mxu0 0.0
        %962 = vmatprep.subr.mxu0 0.0
        %963 = vmatpush1.msra.mxu0 0.0
        %964 = vmatprep.subr.mxu0 0.0
        %965 = vmatpush1.msra.mxu0 0.0
        %966 = vmatprep.subr.mxu0 0.0
        %967 = vmatpush1.msra.mxu0 0.0
        %968 = vmatprep.subr.mxu0 0.0
        %969 = vmatpush1.msra.mxu0 0.0
        %970 = vmatprep.subr.mxu0 0.0
        %971 = vmatpush1.msra.mxu0 0.0
        %972 = vmatprep.subr.mxu0 0.0
        %973 = vmatpush1.msra.mxu0 0.0
        %974 = vmatprep.subr.mxu0 0.0
        %975 = vmatpush1.msra.mxu0 0.0
        %976 = vmatprep.subr.mxu0 0.0
        %977 = vmatpush1.msra.mxu0 0.0
        %978 = vmatprep.subr.mxu0 0.0
        %979 = vmatpush1.msra.mxu0 0.0
        %980 = vmatprep.subr.mxu0 0.0
        %981 = vmatpush1.msra.mxu0 0.0
        %982 = vmatprep.subr.mxu0 0.0
        %983 = vmatpush1.msra.mxu0 0.0
        %984 = vmatprep.subr.mxu0 0.0
        %985 = vmatpush1.msra.mxu0 0.0
        %986 = vmatprep.subr.mxu0 0.0
        %987 = vmatpush1.msra.mxu0 0.0
        %988 = vmatprep.subr.mxu0 0.0
        %989 = vmatpush1.msra.mxu0 0.0
        %990 = vmatprep.subr.mxu0 0.0
        %991 = vmatpush1.msra.mxu0 0.0
        %992 = vmatprep.subr.mxu0 0.0
        %993 = vmatpush1.msra.mxu0 0.0
        %994 = vmatprep.subr.mxu0 0.0
        %995 = vmatpush1.msra.mxu0 0.0
        %996 = vmatprep.subr.mxu0 0.0
        %997 = vmatpush1.msra.mxu0 0.0
        %998 = vmatprep.subr.mxu0 0.0
        %999 = vmatpush1.msra.mxu0 0.0
        %1000 = vmatprep.subr.mxu0 0.0
        %1001 = vmatpush1.msra.mxu0 0.0
        %1002 = vmatprep.subr.mxu0 0.0
        %1003 = vmatpush1.msra.mxu0 0.0
        %1004 = vmatprep.subr.mxu0 0.0
        %1005 = vmatpush1.msra.mxu0 0.0
        %1006 = vmatprep.subr.mxu0 0.0
        %1007 = vmatpush1.msra.mxu0 0.0
        %1008 = vmatprep.subr.mxu0 0.0
        %1009 = vmatpush1.msra.mxu0 0.0
        %1010 = vmatprep.mubr.f32.mxu0 0.0
        %1011 = vmatmul.mubr.f32.gmra.mrb[0].mxu0 %v940
        %v1012 = vpop.f32.mrb[0].mxu0
        %v1013 = vadd.f32 0.0, %v1012
        %v1014 = vpop.f32.mrb[0].mxu0
        %v1015 = vadd.f32 0.0, %v1014
        %1016 = vdwg.mxu0
        %v1017 = vadd.f32 %v921, %v1013
        %v1018 = vadd.f32 %v922, %v1015
        %v1019 = vld [vmem:[%s1] sm:$0xff]
        %1021 = vset.pattern.permute.xlu0 0
        %1022 = vperm.xlu0 %1021, %v1019
        %v1023 = vpop.permute.xlu0 %1022
        %v1025 = vadd.f32 %v1017, %v1023
        %v1026 = vadd.f32 %v1018, %v1023
        %1027 = vst [vmem:[%s163] sm:$0xff] %v1025
        %1028 = vst [vmem:[%s163 + $0x8] sm:$0xff] %v1026
        %s1029 = sand.u32 %s93, 1
        %s1030 = scalar_lea.sflag [#allocation3], %s1029
        %s1031 = sand.u32 %s93, 1
        %s1032 = smul.addr %s1031, 16
        %s1033 = scalar_lea.vmem [#allocation2], %s1032
        // Predicated region
        $region33: #{tpu_custom_call.1} parent=31 // pred_check
          %p1034 = pneg %p103
        $region34: #{tpu_custom_call.1} parent=31 // pred_check_branch
          %1036 = sbr.rel (%p1034) target = $region36
        $region35: #{tpu_custom_call.1} parent=31 // pred_region
          %s1038 = ssub.s32 256, 256
          %1039 = vsyncadd %s1030, %s1038
          %s1040 = smul.addr %s17, 2
          %s1041 = smul.addr %s1040, 128
          %s1042 = scalar_lea.hbm %s3, %s1041
          %s1044 = sshll.u32 %s1033, 4
          %s1045 = int_to_ptr.vmem [resolvable:$true] %s1044
          %1047 = dma.vmem_to_hbm [thread:$0]  %s1045, 256, %s1042, %s1030
        $region36: #{tpu_custom_call.1} parent=31 // pred_fallthru
          _
      $region32: #{tpu_custom_call.1} parent=5 // pred_fallthru
        _
      %p1048 = scmp.le.s32.totalorder 2, %s12
      // Predicated region
      $region37: #{tpu_custom_call.1} parent=5 // pred_check
        %p1049 = pneg %p1048
      $region38: #{tpu_custom_call.1} parent=5 // pred_check_branch
        %1051 = sbr.rel (%p1049) target = $region40
      $region39: #{tpu_custom_call.1} parent=5 // pred_region
        %s1052 = ssub.s32 %s12, 2
        // Predicated region
        $region41: #{tpu_custom_call.1} parent=39 // pred_check
          %p1053 = pneg %p109
        $region42: #{tpu_custom_call.1} parent=39 // pred_check_branch
          %1055 = sbr.rel (%p1053) target = $region44
        $region43: #{tpu_custom_call.1} parent=39 // pred_region
          %s1056 = sand.u32 %s94, 1
          %s1057 = scalar_lea.sflag [#allocation3], %s1056
          %s1058 = sand.u32 %s94, 1
          %s1059 = smul.addr %s1058, 16
          %s1060 = scalar_lea.vmem [#allocation2], %s1059
          %1061 = dma.done %s1057, 256
        $region44: #{tpu_custom_call.1} parent=39 // pred_fallthru
          _
      $region40: #{tpu_custom_call.1} parent=5 // pred_fallthru
        _
    $region6: #{tpu_custom_call.1} parent=1 // loop_footer
      %s16 = sadd.s32 1, %s12
    $region7: #{tpu_custom_call.1} parent=1 // loop_footer_branch
      %11 = sbr.rel target = $region3
    $region8: #{tpu_custom_call.1} parent=1 // loop_exit
      _
    %1062 = vsyncpa [#allocation3], 1
    %s1063 = scalar_lea.sflag [#allocation3], 1
    %1064 = vsyncpa %s1063, 1

</llo_original>
